<compile_context>
chip_gen: v7x
topology: tpu7x:2x2x1
jax: 0.10.0
libtpu: 0.0.40
codegen_flags: <defaults>
</compile_context>

<pallas_src>
import functools
import math
from typing import Tuple

import jax
import jax.numpy as jnp
from jax.experimental import pallas as pl
from jax.experimental.pallas import tpu as pltpu


# ----------------------------------------------------------------------------
# Kernels (lane-dense 2-D layout: rows = flattened batch, lanes = N*D)
# ----------------------------------------------------------------------------
def _add_embed_kernel(x_ref, e_ref, o_ref):
    # x_ref: (TB, TM), e_ref: (1, TM) -> sublane broadcast, o_ref: (TB, TM)
    o_ref[...] = (x_ref[...] + e_ref[...]).astype(o_ref.dtype)


def _add_embed_dropout_kernel(x_ref, e_ref, u_ref, o_ref, *, rate):
    # Inverted dropout (matches torch.dropout semantics).  keep iff u >= rate.
    y = x_ref[...].astype(jnp.float32) + e_ref[...].astype(jnp.float32)
    keep = u_ref[...] >= jnp.float32(rate)
    scale = jnp.float32(1.0 / (1.0 - rate))
    o_ref[...] = jnp.where(keep, y * scale, jnp.float32(0.0)).astype(o_ref.dtype)


# ----------------------------------------------------------------------------
# Tiling helpers
# ----------------------------------------------------------------------------
def _round_up(n, m):
    return ((n + m - 1) // m) * m


def _largest_aligned_divisor(n, unit, cap):
    """Largest d with d % unit == 0, n % d == 0, d <= cap (assumes n % unit == 0)."""
    q = n // unit
    cap_q = max(1, cap // unit)
    best = 1
    for i in range(1, int(math.isqrt(q)) + 1):
        if q % i == 0:
            for cand in (i, q // i):
                if best < cand <= cap_q:
                    best = cand
    return best * unit


def _vmem_budget_bytes():
    """Conservative per-call VMEM budget, per chip generation."""
    try:
        kind = jax.devices()[0].device_kind.lower()
    except Exception:
        kind = ""
    if "v6" in kind or "v7" in kind:
        return 24 << 20          # bigger blocks amortize per-step overhead on fast HBM
    return 12 << 20              # stays under v5e's 16 MiB default scoped VMEM


# ----------------------------------------------------------------------------
# Module-equivalent wrapper
# ----------------------------------------------------------------------------
class PositionalEmbeddingNd:
    def __init__(self, embed_shape: Tuple[int, ...], embed_dim: int,
                 dropout: float = 0.0, *, key=None, dtype=jnp.float32):
        self.embed_shape = tuple(embed_shape)
        self.embed_dim = int(embed_dim)
        self.dropout = float(dropout)
        self.training = False
        if key is None:
            key = jax.random.PRNGKey(0)
        # timm trunc_normal_(std=0.02): truncated normal on [-2, 2] scaled by std
        self.embed = (
            jax.random.truncated_normal(
                key, -2.0, 2.0, (*self.embed_shape, self.embed_dim)) * 0.02
        ).astype(dtype)

    def __call__(self, x, *, seed: int = 0):
        D = self.embed_dim
        embed = self.embed
        # Same check as torch: if trailing dims (excluding channel) mismatch
        # embed_shape, flatten the embedding to (-1, D).
        if x.shape[-embed.ndim:-1] != self.embed_shape:
            embed = embed.reshape(-1, D)

        use_dropout = self.training and self.dropout > 0.0
        out_dtype = jnp.result_type(x.dtype, embed.dtype)

        # Kernel path requires x's trailing dims to exactly match embed's shape.
        if x.ndim < embed.ndim or x.shape[x.ndim - embed.ndim:] != embed.shape:
            # TODO(synk): general torch-style broadcasting with mismatched singleton
            # dims has no clean single-kernel tiling; pure-JAX fallback.
            y = (x + embed).astype(out_dtype)
            if use_dropout:
                if self.dropout >= 1.0:
                    return jnp.zeros_like(y)
                keep = jax.random.bernoulli(jax.random.PRNGKey(seed),
                                            1.0 - self.dropout, y.shape)
                y = jnp.where(keep, y / (1.0 - self.dropout), 0.0).astype(out_dtype)
            return y

        if use_dropout and self.dropout >= 1.0:
            return jnp.zeros(x.shape, out_dtype)

        lead_shape = x.shape[: x.ndim - embed.ndim]
        B = math.prod(lead_shape) if lead_shape else 1
        M = math.prod(embed.shape)                      # = N * D (lane-dense)

        x2 = x.reshape(B, M)
        e2 = embed.reshape(1, M)

        # Pad lanes to a multiple of 128 (lane-dense full-width stores); pad rows to
        # a multiple of 8 only when the batch is big enough to be row-tiled.
        M_pad = _round_up(M, 128)
        B_pad = B if B <= 8 else _round_up(B, 8)
        if (M_pad, B_pad) != (M, B):
            x2 = jnp.pad(x2, ((0, B_pad - B), (0, M_pad - M)))
            e2 = jnp.pad(e2, ((0, 0), (0, M_pad - M)))

        isz_x = jnp.dtype(x2.dtype).itemsize
        isz_e = jnp.dtype(e2.dtype).itemsize
        isz_o = jnp.dtype(out_dtype).itemsize
        isz_u = 4 if use_dropout else 0
        bytes_per_elem = isz_x + isz_e + isz_o + isz_u

        # Double-buffered streams; rows physically padded to 8 sublanes.
        budget = _vmem_budget_bytes()
        cap_elems = max(8 * 128, budget // (2 * bytes_per_elem))

        TM = _largest_aligned_divisor(M_pad, 128, max(128, cap_elems // 8))
        if B_pad <= 8:
            TB = B_pad                                  # full extent (allowed)
        else:
            TB = _largest_aligned_divisor(B_pad, 8, max(8, cap_elems // TM))

        # Guarantee >= 2 grid steps when possible (pipelining; both v7x cores).
        if (M_pad // TM) * (B_pad // TB) < 2:
            if M_pad // 128 >= 2:
                TM = _largest_aligned_divisor(M_pad, 128, max(128, M_pad // 2))
            elif B_pad % 8 == 0 and B_pad // 8 >= 2:
                TB = _largest_aligned_divisor(B_pad, 8, max(8, B_pad // 2))

        n_lane = M_pad // TM
        n_row = B_pad // TB
        # Lane axis OUTER, row axis INNER: embed block index (0, m) is constant
        # across the inner axis, so Pallas DMAs each embed tile exactly once.
        grid = (n_lane, n_row)

        x_spec = pl.BlockSpec((TB, TM), lambda m, r: (r, m))
        e_spec = pl.BlockSpec((1, TM), lambda m, r: (0, m))
        o_spec = pl.BlockSpec((TB, TM), lambda m, r: (r, m))

        out_shape = jax.ShapeDtypeStruct((B_pad, M_pad), out_dtype)
        cparams = pltpu.CompilerParams(
            dimension_semantics=("parallel", "parallel"))
        cost = pl.CostEstimate(
            flops=2 * B * M,
            transcendentals=0,
            bytes_accessed=B * M * (isz_x + isz_o + isz_u) + M * isz_e,
        )

        if use_dropout:
            # TODO(synk): on real TPU hardware the in-kernel PRNG
            # (pltpu.prng_seed / prng_random_bits) would avoid this extra HBM read,
            # but it has no interpret/CPU lowering, so uniforms are fed as an input.
            u = jax.random.uniform(jax.random.PRNGKey(seed), (B_pad, M_pad),
                                   dtype=jnp.float32)
            kernel = functools.partial(_add_embed_dropout_kernel,
                                       rate=float(self.dropout))
            out = pl.pallas_call(
                kernel,
                out_shape=out_shape,
                grid=grid,
                in_specs=[x_spec, e_spec,
                          pl.BlockSpec((TB, TM), lambda m, r: (r, m))],
                out_specs=o_spec,
                compiler_params=cparams,
                cost_estimate=cost,
            )(x2, e2, u)
        else:
            out = pl.pallas_call(
                _add_embed_kernel,
                out_shape=out_shape,
                grid=grid,
                in_specs=[x_spec, e_spec],
                out_specs=o_spec,
                compiler_params=cparams,
                cost_estimate=cost,
            )(x2, e2)

        if (M_pad, B_pad) != (M, B):
            out = out[:B, :M]
        return out.reshape(x.shape)


# ----------------------------------------------------------------------------
# Main
# ----------------------------------------------------------------------------
if __name__ == "__main__":
    key = jax.random.PRNGKey(0)
    k_embed, k_x = jax.random.split(key)

    # Small shapes: embed_shape=(16, 16), embed_dim=32, batch=2
    embed_shape = (16, 16)
    embed_dim = 32
    B = 2

    module = PositionalEmbeddingNd(embed_shape, embed_dim, dropout=0.5, key=k_embed)
    x = jax.random.normal(k_x, (B, *embed_shape, embed_dim), dtype=jnp.float32)
    ref = x + module.embed[None, ...]

    # --- eval mode: dropout is identity -------------------------------------
    module.training = False
    out = jax.block_until_ready(module(x))
    assert out.shape == x.shape
    assert jnp.allclose(out, ref, atol=1e-6), "eval-mode mismatch vs reference"

    # --- training mode: inverted dropout, p = 0.5 ----------------------------
    module.training = True
    out_d = jax.block_until_ready(module(x, seed=123))
    assert out_d.shape == x.shape
    kept = out_d != 0
    keep_frac = float(jnp.mean(kept.astype(jnp.float32)))
    assert 0.35 < keep_frac < 0.65, f"unexpected keep fraction {keep_frac}"
    # Kept elements must equal (x + embed) / (1 - p).
    assert jnp.allclose(jnp.where(kept, out_d, 0.0),
                        jnp.where(kept, ref * 2.0, 0.0),
                        atol=1e-5, rtol=1e-5), "dropout-mode mismatch vs reference"

    # TODO(synk): the dropout RNG stream will not bit-match torch's RNG; semantics
    # (per-element Bernoulli keep, 1/(1-p) scaling) are equivalent.

    print("KERNEL_OK")
</pallas_src>

<mosaic_0001>
module attributes {stable_mosaic.version = 11 : i64} {
  func.func @_add_embed_kernel(%arg0: i32, %arg1: i32, %arg2: memref<2x4096xf32, #tpu.memory_space<vmem>>, %arg3: memref<1x4096xf32, #tpu.memory_space<vmem>>, %arg4: memref<2x4096xf32, #tpu.memory_space<vmem>>) attributes {dimension_semantics = [#tpu.dimension_semantics<parallel>, #tpu.dimension_semantics<parallel>], iteration_bounds = array<i64: 2, 1>, scalar_prefetch = 0 : i64, scratch_operands = 0 : i64, tpu.core_type = #tpu.core_type<tc>, window_params = [{transform_indices = @transform_0, window_bounds = array<i64: 2, 4096>}, {transform_indices = @transform_1, window_bounds = array<i64: 1, 4096>}, {transform_indices = @transform_2, window_bounds = array<i64: 2, 4096>}]} {
    %c0 = arith.constant 0 : index
    %c0_0 = arith.constant 0 : index
    %0 = vector.load %arg2[%c0, %c0_0] : memref<2x4096xf32, #tpu.memory_space<vmem>>, vector<2x4096xf32>
    %c0_1 = arith.constant 0 : index
    %c0_2 = arith.constant 0 : index
    %1 = vector.load %arg3[%c0_1, %c0_2] : memref<1x4096xf32, #tpu.memory_space<vmem>>, vector<1x4096xf32>
    %2 = vector.broadcast %1 : vector<1x4096xf32> to vector<2x4096xf32>
    %3 = arith.addf %0, %2 : vector<2x4096xf32>
    %c0_3 = arith.constant 0 : index
    %c0_4 = arith.constant 0 : index
    %4 = vector.load %arg4[%c0_3, %c0_4] : memref<2x4096xf32, #tpu.memory_space<vmem>>, vector<2x4096xf32>
    tpu.vector_store %arg4[%c0_3, %c0_4], %3 {strides = array<i32>} : memref<2x4096xf32, #tpu.memory_space<vmem>>, vector<2x4096xf32>,
    return
  }
  func.func @transform_0(%arg0: i32, %arg1: i32) -> (i32, i32) {
    %c0_i32 = arith.constant 0 : i32
    return %arg1, %arg0 : i32, i32
  }
  func.func @transform_1(%arg0: i32, %arg1: i32) -> (i32, i32) {
    %c0_i32 = arith.constant 0 : i32
    %c0_i32_0 = arith.constant 0 : i32
    return %c0_i32, %arg0 : i32, i32
  }
  func.func @transform_2(%arg0: i32, %arg1: i32) -> (i32, i32) {
    %c0_i32 = arith.constant 0 : i32
    return %arg1, %arg0 : i32, i32
  }
}

</mosaic_0001>

<llo_original>
// kernel: tpu_custom_call.1
$region0: #{tpu_custom_call.1}
  #allocation0 [shape = 'u32[]', space=smem, size = 0x4, offset = 0x4, fixed_abs, tag = 'smem constant byte address 0x4 - core index']
  #allocation1 [shape = 'u32[144,128]{1,0:T(1,128)}', space=vmem, size = 0x12000, scoped, tag = 'internal scratch']
  %s0 = inlined_call_operand.hbm [shape: f32[2,8192], index: 0, kind: input, shape index: {}]
  %s1 = inlined_call_operand.hbm [shape: f32[1,8192], index: 1, kind: input, shape index: {}]
  %s2 = inlined_call_operand.hbm [shape: f32[2,8192], index: 2, kind: output, shape index: {}]
  %s3 = sld [smem:[#allocation0]]
  $region49: #{tpu_custom_call.1} parent=0
    _
  %s5 = ssub.s32 1, %s3
  %s6 = scalar_select 0, %s5, %s3
  $region1: #{tpu_custom_call.1} parent=0
    #allocation2 [shape = 'u8[65536]{0}', space=vmem, size = 0x10000, scoped, tag = 'input window, operand 0']
    #allocation3 [shape = 's32[2]{0}', space=sflag, size = 0x8, scoped, tag = 'scoped memory for tpu_custom_call.1']
    #allocation4 [shape = 's32[2]{0}', space=sflag, size = 0x8, scoped, tag = 'scoped memory for tpu_custom_call.1']
    #allocation5 [shape = 'u8[32768]{0}', space=vmem, size = 0x8000, scoped, tag = 'input window, operand 1']
    #allocation6 [shape = 's32[2]{0}', space=sflag, size = 0x8, scoped, tag = 'scoped memory for tpu_custom_call.1']
    #allocation7 [shape = 'u8[65536]{0}', space=vmem, size = 0x10000, scoped, tag = 'output window, operand 0']
    %7 = vsyncpa [#allocation3], 0
    %s8 = scalar_lea.sflag [#allocation3], 1
    %9 = vsyncpa %s8, 0
    %10 = vsyncpa [#allocation6], 0
    %s11 = scalar_lea.sflag [#allocation6], 1
    %12 = vsyncpa %s11, 0
    %13 = vsyncpa [#allocation4], 0
    %s14 = scalar_lea.sflag [#allocation4], 1
    %15 = vsyncpa %s14, 0
    loop: start=0, step=1, limit=4
    $region2: #{tpu_custom_call.1} parent=1 // loop_pre_header
      _
    $region3: #{tpu_custom_call.1} parent=1 // loop_header
      %s17 = sphi 0, %s21
      %p18 = scmp.ge.s32.totalorder %s17, 4
      %s24 = sphi 0, %s36
      %s25 = sphi 0, %s32
      %s26 = sphi 0, %s24
      %s27 = sphi 0, %s25
      %s28 = sphi 0, %s26
      %s29 = sphi 0, %s27
      %s41 = sphi 0, %s43
      %s44 = sphi 0, %s41
      %s45 = sphi 0, %s44
      %s61 = sphi 0, %s45
      %s67 = sphi 0, %s69
      %s70 = sphi 0, %s67
      %s71 = sphi 0, %s70
      %s87 = sphi 0, %s71
      %s95 = sphi 0, %s97
      %s98 = sphi 0, %s95
      %s99 = sphi 0, %s98
      %s115 = sphi 0, %s99
    $region4: #{tpu_custom_call.1} parent=1 // loop_header_branch
      %20 = sbr.rel (%p18) target = $region8
    $region5: #{tpu_custom_call.1} parent=1 // loop_body
      %s22 = ssub.s32 %s17, 1
      %s23 = ssub.s32 %s17, 2
      %s30 = sadd.s32 1, %s25
      %p31 = scmp.ge.s32.totalorder %s30, 1
      %s32 = scalar_select %p31, 0, %s30
      %s33 = sadd.s32 1, %s24
      %s34 = scalar_select %p31, %s33, %s24
      %p35 = scmp.ge.s32.totalorder %s34, 2
      %s36 = scalar_select %p35, 0, %s34
      %s37 = ssub.s32 %s25, %s32
      %s38 = ssub.s32 %s24, %s36
      %s39 = sor.u32 %s37, %s38
      %p40 = scmp.eq.s32.totalorder %s39, 0
      %s42 = sadd.s32 %s41, 1
      %s43 = scalar_select %p40, %s41, %s42
      %p46 = pneg %p40
      %p47 = scmp.eq.s32.totalorder %s17, 1
      %p48 = por %p46, %p47
      %p49 = scmp.ne.s32.totalorder %s41, %s44
      %p50 = scmp.eq.s32.totalorder %s17, 0
      %p51 = por %p49, %p50
      %p52 = scmp.ne.s32.totalorder %s41, %s44
      %p53 = scmp.eq.s32.totalorder %s22, 1
      %p54 = por %p52, %p53
      %p55 = scmp.ne.s32.totalorder %s44, %s45
      %p56 = scmp.eq.s32.totalorder %s22, 0
      %p57 = por %p55, %p56
      %p58 = scmp.ne.s32.totalorder %s44, %s45
      %p59 = scmp.eq.s32.totalorder %s23, 1
      %p60 = por %p58, %p59
      %p62 = scmp.ne.s32.totalorder %s45, %s61
      %p63 = scmp.eq.s32.totalorder %s23, 0
      %p64 = por %p62, %p63
      %s65 = ssub.s32 %s24, %s36
      %p66 = scmp.eq.s32.totalorder %s65, 0
      %s68 = sadd.s32 %s67, 1
      %s69 = scalar_select %p66, %s67, %s68
      %p72 = pneg %p66
      %p73 = scmp.eq.s32.totalorder %s17, 1
      %p74 = por %p72, %p73
      %p75 = scmp.ne.s32.totalorder %s67, %s70
      %p76 = scmp.eq.s32.totalorder %s17, 0
      %p77 = por %p75, %p76
      %p78 = scmp.ne.s32.totalorder %s67, %s70
      %p79 = scmp.eq.s32.totalorder %s22, 1
      %p80 = por %p78, %p79
      %p81 = scmp.ne.s32.totalorder %s70, %s71
      %p82 = scmp.eq.s32.totalorder %s22, 0
      %p83 = por %p81, %p82
      %p84 = scmp.ne.s32.totalorder %s70, %s71
      %p85 = scmp.eq.s32.totalorder %s23, 1
      %p86 = por %p84, %p85
      %p88 = scmp.ne.s32.totalorder %s71, %s87
      %p89 = scmp.eq.s32.totalorder %s23, 0
      %p90 = por %p88, %p89
      %s91 = ssub.s32 %s25, %s32
      %s92 = ssub.s32 %s24, %s36
      %s93 = sor.u32 %s91, %s92
      %p94 = scmp.eq.s32.totalorder %s93, 0
      %s96 = sadd.s32 %s95, 1
      %s97 = scalar_select %p94, %s95, %s96
      %p100 = pneg %p94
      %p101 = scmp.eq.s32.totalorder %s17, 1
      %p102 = por %p100, %p101
      %p103 = scmp.ne.s32.totalorder %s95, %s98
      %p104 = scmp.eq.s32.totalorder %s17, 0
      %p105 = por %p103, %p104
      %p106 = scmp.ne.s32.totalorder %s95, %s98
      %p107 = scmp.eq.s32.totalorder %s22, 1
      %p108 = por %p106, %p107
      %p109 = scmp.ne.s32.totalorder %s98, %s99
      %p110 = scmp.eq.s32.totalorder %s22, 0
      %p111 = por %p109, %p110
      %p112 = scmp.ne.s32.totalorder %s98, %s99
      %p113 = scmp.eq.s32.totalorder %s23, 1
      %p114 = por %p112, %p113
      %p116 = scmp.ne.s32.totalorder %s99, %s115
      %p117 = scmp.eq.s32.totalorder %s23, 0
      %p118 = por %p116, %p117
      %p119 = scmp.le.s32.totalorder 1, %s17
      %p120 = scmp.lt.s32.totalorder %s17, 3
      %p121 = pnand %p119, %p120
      %p122 = pneg %p121
      // Predicated region
      $region9: #{tpu_custom_call.1} parent=5 // pred_check
        _
      $region10: #{tpu_custom_call.1} parent=5 // pred_check_branch
        %124 = sbr.rel (%p121) target = $region12
      $region11: #{tpu_custom_call.1} parent=5 // pred_region
        %s125 = ssub.s32 %s17, 1
      $region12: #{tpu_custom_call.1} parent=5 // pred_fallthru
        _
      %p126 = scmp.lt.s32.totalorder %s17, 2
      // Predicated region
      $region13: #{tpu_custom_call.1} parent=5 // pred_check
        %p127 = pneg %p126
      $region14: #{tpu_custom_call.1} parent=5 // pred_check_branch
        %129 = sbr.rel (%p127) target = $region16
      $region15: #{tpu_custom_call.1} parent=5 // pred_region
        // Predicated region
        $region17: #{tpu_custom_call.1} parent=15 // pred_check
          %p130 = pneg %p51
        $region18: #{tpu_custom_call.1} parent=15 // pred_check_branch
          %132 = sbr.rel (%p130) target = $region20
        $region19: #{tpu_custom_call.1} parent=15 // pred_region
          %s133 = sand.u32 %s41, 1
          %s134 = scalar_lea.sflag [#allocation3], %s133
          %s135 = sand.u32 %s41, 1
          %s136 = smul.addr %s135, 64
          %s137 = scalar_lea.vmem [#allocation2], %s136
          %s138 = smul.u32 32, %s24
          %s140 = ssub.s32 1024, 1024
          %141 = vsyncadd %s134, %s140
          %s142 = smul.addr %s25, 64
          %s143 = sadd.s32 %s138, %s142
          %s144 = smul.addr %s143, 32
          %s145 = scalar_lea.hbm %s0, %s144
          %s147 = sshll.u32 %s137, 4
          %s148 = int_to_ptr.vmem [resolvable:$true] %s147
          %150 = dma.hbm_to_vmem [thread:$0]  %s145, 1024, %s148, %s134
        $region20: #{tpu_custom_call.1} parent=15 // pred_fallthru
          _
        // Predicated region
        $region21: #{tpu_custom_call.1} parent=15 // pred_check
          %p151 = pneg %p77
        $region22: #{tpu_custom_call.1} parent=15 // pred_check_branch
          %153 = sbr.rel (%p151) target = $region24
        $region23: #{tpu_custom_call.1} parent=15 // pred_region
          %s154 = sand.u32 %s67, 1
          %s155 = scalar_lea.sflag [#allocation6], %s154
          %s156 = sand.u32 %s67, 1
          %s157 = smul.addr %s156, 32
          %s158 = scalar_lea.vmem [#allocation5], %s157
          %s159 = smul.u32 32, %s24
          %s161 = ssub.s32 512, 512
          %162 = vsyncadd %s155, %s161
          %s163 = smul.addr %s159, 16
          %s164 = scalar_lea.hbm %s1, %s163
          %s166 = sshll.u32 %s158, 4
          %s167 = int_to_ptr.vmem [resolvable:$true] %s166
          %169 = dma.hbm_to_vmem [thread:$0]  %s164, 512, %s167, %s155
        $region24: #{tpu_custom_call.1} parent=15 // pred_fallthru
          _
      $region16: #{tpu_custom_call.1} parent=5 // pred_fallthru
        _
      %p170 = scmp.le.s32.totalorder 1, %s17
      %p171 = scmp.lt.s32.totalorder %s17, 3
      %p172 = pnand %p170, %p171
      %p173 = pneg %p172
      // Predicated region
      $region25: #{tpu_custom_call.1} parent=5 // pred_check
        _
      $region26: #{tpu_custom_call.1} parent=5 // pred_check_branch
        %175 = sbr.rel (%p172) target = $region28
      $region27: #{tpu_custom_call.1} parent=5 // pred_region
        %s176 = ssub.s32 %s17, 1
        %s177 = sand.u32 %s44, 1
        %s178 = scalar_lea.sflag [#allocation3], %s177
        %s179 = sand.u32 %s44, 1
        %s180 = smul.addr %s179, 64
        %s181 = scalar_lea.vmem [#allocation2], %s180
        // Predicated region
        $region29: #{tpu_custom_call.1} parent=27 // pred_check
          %p182 = pneg %p57
        $region30: #{tpu_custom_call.1} parent=27 // pred_check_branch
          %184 = sbr.rel (%p182) target = $region32
        $region31: #{tpu_custom_call.1} parent=27 // pred_region
          %185 = dma.done %s178, 1024
        $region32: #{tpu_custom_call.1} parent=27 // pred_fallthru
          _
        %s186 = sand.u32 %s70, 1
        %s187 = scalar_lea.sflag [#allocation6], %s186
        %s188 = sand.u32 %s70, 1
        %s189 = smul.addr %s188, 32
        %s190 = scalar_lea.vmem [#allocation5], %s189
        // Predicated region
        $region33: #{tpu_custom_call.1} parent=27 // pred_check
          %p191 = pneg %p83
        $region34: #{tpu_custom_call.1} parent=27 // pred_check_branch
          %193 = sbr.rel (%p191) target = $region36
        $region35: #{tpu_custom_call.1} parent=27 // pred_region
          %194 = dma.done %s187, 512
        $region36: #{tpu_custom_call.1} parent=27 // pred_fallthru
          _
        %s195 = sand.u32 %s44, 1
        %s196 = scalar_lea.sflag [#allocation3], %s195
        %s197 = sand.u32 %s44, 1
        %s198 = smul.addr %s197, 64
        %s199 = scalar_lea.vmem [#allocation2], %s198
        %p200 = pneg %p57
        %p201 = pneg %p54
        %s202 = sand.u32 %s70, 1
        %s203 = scalar_lea.sflag [#allocation6], %s202
        %s204 = sand.u32 %s70, 1
        %s205 = smul.addr %s204, 32
        %s206 = scalar_lea.vmem [#allocation5], %s205
        %p207 = pneg %p83
        %p208 = pneg %p80
        %p209 = pneg %p111
        %p210 = pneg %p108
        %s211 = sand.u32 %s98, 1
        %s212 = scalar_lea.sflag [#allocation4], %s211
        %s213 = sand.u32 %s98, 1
        %s214 = smul.addr %s213, 64
        %s215 = scalar_lea.vmem [#allocation7], %s214
        %s216 = smul.u32 32, %s26
        %s217 = smul.u32 32, %s26
        %s218 = smul.u32 32, %s26
        %v219 = vld [vmem:[%s181] sm:$0xff]
        %v220 = vld [vmem:[%s181 + $0x8] sm:$0xff]
        %v221 = vld [vmem:[%s181 + $0x10] sm:$0xff]
        %v222 = vld [vmem:[%s181 + $0x18] sm:$0xff]
        %v223 = vld [vmem:[%s181 + $0x20] sm:$0xff]
        %v224 = vld [vmem:[%s181 + $0x28] sm:$0xff]
        %v225 = vld [vmem:[%s181 + $0x30] sm:$0xff]
        %v226 = vld [vmem:[%s181 + $0x38] sm:$0xff]
        %v227 = vld [vmem:[%s190] sm:$0xff]
        %v228 = vld [vmem:[%s190 + $0x8] sm:$0xff]
        %v229 = vld [vmem:[%s190 + $0x10] sm:$0xff]
        %v230 = vld [vmem:[%s190 + $0x18] sm:$0xff]
        %v235 = vlaneseq
        %v236 = vshrl.u32 %v235, 7
        %v237 = vsub.s32 0, %v236
        %v238 = vrot.slane %v227, %v237
        %v239 = vlaneseq
        %v240 = vshrl.u32 %v239, 7
        %v241 = vsub.s32 1, %v240
        %v242 = vrot.slane %v227, %v241
        %v243 = vlaneseq
        %v244 = vshrl.u32 %v243, 7
        %v245 = vsub.s32 2, %v244
        %v246 = vrot.slane %v227, %v245
        %v247 = vlaneseq
        %v248 = vshrl.u32 %v247, 7
        %v249 = vsub.s32 3, %v248
        %v250 = vrot.slane %v227, %v249
        %v251 = vlaneseq
        %v252 = vshrl.u32 %v251, 7
        %v253 = vsub.s32 4, %v252
        %v254 = vrot.slane %v227, %v253
        %v255 = vlaneseq
        %v256 = vshrl.u32 %v255, 7
        %v257 = vsub.s32 5, %v256
        %v258 = vrot.slane %v227, %v257
        %v259 = vlaneseq
        %v260 = vshrl.u32 %v259, 7
        %v261 = vsub.s32 6, %v260
        %v262 = vrot.slane %v227, %v261
        %v263 = vlaneseq
        %v264 = vshrl.u32 %v263, 7
        %v265 = vsub.s32 7, %v264
        %v266 = vrot.slane %v227, %v265
        %v267 = vlaneseq
        %v268 = vshrl.u32 %v267, 7
        %v269 = vsub.s32 0, %v268
        %v270 = vrot.slane %v228, %v269
        %v271 = vlaneseq
        %v272 = vshrl.u32 %v271, 7
        %v273 = vsub.s32 1, %v272
        %v274 = vrot.slane %v228, %v273
        %v275 = vlaneseq
        %v276 = vshrl.u32 %v275, 7
        %v277 = vsub.s32 2, %v276
        %v278 = vrot.slane %v228, %v277
        %v279 = vlaneseq
        %v280 = vshrl.u32 %v279, 7
        %v281 = vsub.s32 3, %v280
        %v282 = vrot.slane %v228, %v281
        %v283 = vlaneseq
        %v284 = vshrl.u32 %v283, 7
        %v285 = vsub.s32 4, %v284
        %v286 = vrot.slane %v228, %v285
        %v287 = vlaneseq
        %v288 = vshrl.u32 %v287, 7
        %v289 = vsub.s32 5, %v288
        %v290 = vrot.slane %v228, %v289
        %v291 = vlaneseq
        %v292 = vshrl.u32 %v291, 7
        %v293 = vsub.s32 6, %v292
        %v294 = vrot.slane %v228, %v293
        %v295 = vlaneseq
        %v296 = vshrl.u32 %v295, 7
        %v297 = vsub.s32 7, %v296
        %v298 = vrot.slane %v228, %v297
        %v299 = vlaneseq
        %v300 = vshrl.u32 %v299, 7
        %v301 = vsub.s32 0, %v300
        %v302 = vrot.slane %v229, %v301
        %v303 = vlaneseq
        %v304 = vshrl.u32 %v303, 7
        %v305 = vsub.s32 1, %v304
        %v306 = vrot.slane %v229, %v305
        %v307 = vlaneseq
        %v308 = vshrl.u32 %v307, 7
        %v309 = vsub.s32 2, %v308
        %v310 = vrot.slane %v229, %v309
        %v311 = vlaneseq
        %v312 = vshrl.u32 %v311, 7
        %v313 = vsub.s32 3, %v312
        %v314 = vrot.slane %v229, %v313
        %v315 = vlaneseq
        %v316 = vshrl.u32 %v315, 7
        %v317 = vsub.s32 4, %v316
        %v318 = vrot.slane %v229, %v317
        %v319 = vlaneseq
        %v320 = vshrl.u32 %v319, 7
        %v321 = vsub.s32 5, %v320
        %v322 = vrot.slane %v229, %v321
        %v323 = vlaneseq
        %v324 = vshrl.u32 %v323, 7
        %v325 = vsub.s32 6, %v324
        %v326 = vrot.slane %v229, %v325
        %v327 = vlaneseq
        %v328 = vshrl.u32 %v327, 7
        %v329 = vsub.s32 7, %v328
        %v330 = vrot.slane %v229, %v329
        %v331 = vlaneseq
        %v332 = vshrl.u32 %v331, 7
        %v333 = vsub.s32 0, %v332
        %v334 = vrot.slane %v230, %v333
        %v335 = vlaneseq
        %v336 = vshrl.u32 %v335, 7
        %v337 = vsub.s32 1, %v336
        %v338 = vrot.slane %v230, %v337
        %v339 = vlaneseq
        %v340 = vshrl.u32 %v339, 7
        %v341 = vsub.s32 2, %v340
        %v342 = vrot.slane %v230, %v341
        %v343 = vlaneseq
        %v344 = vshrl.u32 %v343, 7
        %v345 = vsub.s32 3, %v344
        %v346 = vrot.slane %v230, %v345
        %v347 = vlaneseq
        %v348 = vshrl.u32 %v347, 7
        %v349 = vsub.s32 4, %v348
        %v350 = vrot.slane %v230, %v349
        %v351 = vlaneseq
        %v352 = vshrl.u32 %v351, 7
        %v353 = vsub.s32 5, %v352
        %v354 = vrot.slane %v230, %v353
        %v355 = vlaneseq
        %v356 = vshrl.u32 %v355, 7
        %v357 = vsub.s32 6, %v356
        %v358 = vrot.slane %v230, %v357
        %v359 = vlaneseq
        %v360 = vshrl.u32 %v359, 7
        %v361 = vsub.s32 7, %v360
        %v362 = vrot.slane %v230, %v361
        %v363 = vcombine.low %v238, %v242
        %v364 = vcombine.low %v246, %v250
        %v366 = vunpack.c.l.s4 1983009808
        %v367 = vunpack.c.0.s8 %v366
        %v368 = vlaneseq
        %v369 = vshrl.u32 %v368, 7
        %v370 = vsub.s32 %v367, %v369
        %v371 = vrot.slane %v363, %v370
        %v373 = vunpack.c.l.s4 1983009808
        %v374 = vunpack.c.0.s8 %v373
        %v375 = vlaneseq
        %v376 = vshrl.u32 %v375, 7
        %v377 = vsub.s32 %v374, %v376
        %v378 = vrot.slane %v364, %v377
        %v379 = vcombine.low %v371, %v378
        %v380 = vcombine.low %v254, %v258
        %v381 = vcombine.low %v262, %v266
        %v383 = vunpack.c.l.s4 1983009808
        %v384 = vunpack.c.0.s8 %v383
        %v385 = vlaneseq
        %v386 = vshrl.u32 %v385, 7
        %v387 = vsub.s32 %v384, %v386
        %v388 = vrot.slane %v380, %v387
        %v390 = vunpack.c.l.s4 1983009808
        %v391 = vunpack.c.0.s8 %v390
        %v392 = vlaneseq
        %v393 = vshrl.u32 %v392, 7
        %v394 = vsub.s32 %v391, %v393
        %v395 = vrot.slane %v381, %v394
        %v396 = vcombine.low %v388, %v395
        %v397 = vcombine.low %v270, %v274
        %v398 = vcombine.low %v278, %v282
        %v400 = vunpack.c.l.s4 1983009808
        %v401 = vunpack.c.0.s8 %v400
        %v402 = vlaneseq
        %v403 = vshrl.u32 %v402, 7
        %v404 = vsub.s32 %v401, %v403
        %v405 = vrot.slane %v397, %v404
        %v407 = vunpack.c.l.s4 1983009808
        %v408 = vunpack.c.0.s8 %v407
        %v409 = vlaneseq
        %v410 = vshrl.u32 %v409, 7
        %v411 = vsub.s32 %v408, %v410
        %v412 = vrot.slane %v398, %v411
        %v413 = vcombine.low %v405, %v412
        %v414 = vcombine.low %v286, %v290
        %v415 = vcombine.low %v294, %v298
        %v417 = vunpack.c.l.s4 1983009808
        %v418 = vunpack.c.0.s8 %v417
        %v419 = vlaneseq
        %v420 = vshrl.u32 %v419, 7
        %v421 = vsub.s32 %v418, %v420
        %v422 = vrot.slane %v414, %v421
        %v424 = vunpack.c.l.s4 1983009808
        %v425 = vunpack.c.0.s8 %v424
        %v426 = vlaneseq
        %v427 = vshrl.u32 %v426, 7
        %v428 = vsub.s32 %v425, %v427
        %v429 = vrot.slane %v415, %v428
        %v430 = vcombine.low %v422, %v429
        %v431 = vcombine.low %v302, %v306
        %v432 = vcombine.low %v310, %v314
        %v434 = vunpack.c.l.s4 1983009808
        %v435 = vunpack.c.0.s8 %v434
        %v436 = vlaneseq
        %v437 = vshrl.u32 %v436, 7
        %v438 = vsub.s32 %v435, %v437
        %v439 = vrot.slane %v431, %v438
        %v441 = vunpack.c.l.s4 1983009808
        %v442 = vunpack.c.0.s8 %v441
        %v443 = vlaneseq
        %v444 = vshrl.u32 %v443, 7
        %v445 = vsub.s32 %v442, %v444
        %v446 = vrot.slane %v432, %v445
        %v447 = vcombine.low %v439, %v446
        %v448 = vcombine.low %v318, %v322
        %v449 = vcombine.low %v326, %v330
        %v451 = vunpack.c.l.s4 1983009808
        %v452 = vunpack.c.0.s8 %v451
        %v453 = vlaneseq
        %v454 = vshrl.u32 %v453, 7
        %v455 = vsub.s32 %v452, %v454
        %v456 = vrot.slane %v448, %v455
        %v458 = vunpack.c.l.s4 1983009808
        %v459 = vunpack.c.0.s8 %v458
        %v460 = vlaneseq
        %v461 = vshrl.u32 %v460, 7
        %v462 = vsub.s32 %v459, %v461
        %v463 = vrot.slane %v449, %v462
        %v464 = vcombine.low %v456, %v463
        %v465 = vcombine.low %v334, %v338
        %v466 = vcombine.low %v342, %v346
        %v468 = vunpack.c.l.s4 1983009808
        %v469 = vunpack.c.0.s8 %v468
        %v470 = vlaneseq
        %v471 = vshrl.u32 %v470, 7
        %v472 = vsub.s32 %v469, %v471
        %v473 = vrot.slane %v465, %v472
        %v475 = vunpack.c.l.s4 1983009808
        %v476 = vunpack.c.0.s8 %v475
        %v477 = vlaneseq
        %v478 = vshrl.u32 %v477, 7
        %v479 = vsub.s32 %v476, %v478
        %v480 = vrot.slane %v466, %v479
        %v481 = vcombine.low %v473, %v480
        %v482 = vcombine.low %v350, %v354
        %v483 = vcombine.low %v358, %v362
        %v485 = vunpack.c.l.s4 1983009808
        %v486 = vunpack.c.0.s8 %v485
        %v487 = vlaneseq
        %v488 = vshrl.u32 %v487, 7
        %v489 = vsub.s32 %v486, %v488
        %v490 = vrot.slane %v482, %v489
        %v492 = vunpack.c.l.s4 1983009808
        %v493 = vunpack.c.0.s8 %v492
        %v494 = vlaneseq
        %v495 = vshrl.u32 %v494, 7
        %v496 = vsub.s32 %v493, %v495
        %v497 = vrot.slane %v483, %v496
        %v498 = vcombine.low %v490, %v497
        %v507 = vadd.f32 %v219, %v379
        %v508 = vadd.f32 %v220, %v396
        %v509 = vadd.f32 %v221, %v413
        %v510 = vadd.f32 %v222, %v430
        %v511 = vadd.f32 %v223, %v447
        %v512 = vadd.f32 %v224, %v464
        %v513 = vadd.f32 %v225, %v481
        %v514 = vadd.f32 %v226, %v498
        %515 = vst [vmem:[%s215] sm:$0xff] %v507
        %516 = vst [vmem:[%s215 + $0x8] sm:$0xff] %v508
        %517 = vst [vmem:[%s215 + $0x10] sm:$0xff] %v509
        %518 = vst [vmem:[%s215 + $0x18] sm:$0xff] %v510
        %519 = vst [vmem:[%s215 + $0x20] sm:$0xff] %v511
        %520 = vst [vmem:[%s215 + $0x28] sm:$0xff] %v512
        %521 = vst [vmem:[%s215 + $0x30] sm:$0xff] %v513
        %522 = vst [vmem:[%s215 + $0x38] sm:$0xff] %v514
        %s523 = sand.u32 %s98, 1
        %s524 = scalar_lea.sflag [#allocation4], %s523
        %s525 = sand.u32 %s98, 1
        %s526 = smul.addr %s525, 64
        %s527 = scalar_lea.vmem [#allocation7], %s526
        // Predicated region
        $region37: #{tpu_custom_call.1} parent=27 // pred_check
          %p528 = pneg %p108
        $region38: #{tpu_custom_call.1} parent=27 // pred_check_branch
          %530 = sbr.rel (%p528) target = $region40
        $region39: #{tpu_custom_call.1} parent=27 // pred_region
          %s531 = smul.u32 32, %s26
          %s533 = ssub.s32 1024, 1024
          %534 = vsyncadd %s524, %s533
          %s535 = smul.addr %s27, 64
          %s536 = sadd.s32 %s531, %s535
          %s537 = smul.addr %s536, 32
          %s538 = scalar_lea.hbm %s2, %s537
          %s540 = sshll.u32 %s527, 4
          %s541 = int_to_ptr.vmem [resolvable:$true] %s540
          %543 = dma.vmem_to_hbm [thread:$0]  %s541, 1024, %s538, %s524
        $region40: #{tpu_custom_call.1} parent=27 // pred_fallthru
          _
      $region28: #{tpu_custom_call.1} parent=5 // pred_fallthru
        _
      %p544 = scmp.le.s32.totalorder 2, %s17
      // Predicated region
      $region41: #{tpu_custom_call.1} parent=5 // pred_check
        %p545 = pneg %p544
      $region42: #{tpu_custom_call.1} parent=5 // pred_check_branch
        %547 = sbr.rel (%p545) target = $region44
      $region43: #{tpu_custom_call.1} parent=5 // pred_region
        %s548 = ssub.s32 %s17, 2
        // Predicated region
        $region45: #{tpu_custom_call.1} parent=43 // pred_check
          %p549 = pneg %p114
        $region46: #{tpu_custom_call.1} parent=43 // pred_check_branch
          %551 = sbr.rel (%p549) target = $region48
        $region47: #{tpu_custom_call.1} parent=43 // pred_region
          %s552 = sand.u32 %s99, 1
          %s553 = scalar_lea.sflag [#allocation4], %s552
          %s554 = sand.u32 %s99, 1
          %s555 = smul.addr %s554, 64
          %s556 = scalar_lea.vmem [#allocation7], %s555
          %557 = dma.done %s553, 1024
        $region48: #{tpu_custom_call.1} parent=43 // pred_fallthru
          _
      $region44: #{tpu_custom_call.1} parent=5 // pred_fallthru
        _
    $region6: #{tpu_custom_call.1} parent=1 // loop_footer
      %s21 = sadd.s32 1, %s17
    $region7: #{tpu_custom_call.1} parent=1 // loop_footer_branch
      %16 = sbr.rel target = $region3
    $region8: #{tpu_custom_call.1} parent=1 // loop_exit
      _
    %558 = vsyncpa [#allocation3], 1
    %s559 = scalar_lea.sflag [#allocation3], 1
    %560 = vsyncpa %s559, 1
    %561 = vsyncpa [#allocation6], 1
    %s562 = scalar_lea.sflag [#allocation6], 1
    %563 = vsyncpa %s562, 1
    %564 = vsyncpa [#allocation4], 1
    %s565 = scalar_lea.sflag [#allocation4], 1
    %566 = vsyncpa %s565, 1

</llo_original>
